<compile_context>
chip_gen: v7x
topology: tpu7x:2x2x1
jax: 0.10.0
libtpu: 0.0.40
codegen_flags: <defaults>
</compile_context>

<pallas_src>
from functools import partial

import jax
import jax.numpy as jnp
import numpy as np
from jax.experimental import pallas as pl
from jax.experimental.pallas import tpu as pltpu

EPS = 1e-5  # PyTorch BatchNorm1d default eps


def _round_up(x, m):
    return ((x + m - 1) // m) * m


# --------------------------------------------------------------------------
# Kernel: three Linear stages (BNs already folded into the weights/biases).
# --------------------------------------------------------------------------
def ffnn_kernel(x_ref, w1_ref, b1_ref, w2_ref, b2_ref, w3_ref, b3_ref, out_ref):
    # layer 1: Linear + ReLU   (bn_cont folded into w1/b1, bn1 folded into w2/b2)
    h = jnp.dot(x_ref[...], w1_ref[...], preferred_element_type=jnp.float32) + b1_ref[...]
    h = jnp.maximum(h, 0.0)

    # layer 2: Linear + ReLU   (bn2 folded into w3/b3)
    h = jnp.dot(h, w2_ref[...], preferred_element_type=jnp.float32) + b2_ref[...]
    h = jnp.maximum(h, 0.0)

    # final Linear
    out_ref[...] = jnp.dot(h, w3_ref[...], preferred_element_type=jnp.float32) + b3_ref[...]


# --------------------------------------------------------------------------
# Wrapper: embedding gather + batch-tiled pallas_call, all under one jit.
# --------------------------------------------------------------------------
@partial(jax.jit, static_argnames=("block_b",))
def feedforward_nn(x_cat, x_cont, kparams, block_b=512):
    # Embedding lookups (gather) stay in plain-JAX glue, fused under this jit.
    embs = [kparams["emb_tables"][i][x_cat[:, i]]
            for i in range(len(kparams["emb_tables"]))]
    x = jnp.concatenate(embs + [x_cont.astype(jnp.float32)], axis=1)  # (B, n_emb+n_cont)

    B, K = x.shape
    H1P = kparams["w1"].shape[1]
    H2P = kparams["w2"].shape[1]
    out_sz = kparams["w3"].shape[1]

    # Batch tile: multiple of 8 sublanes, up to block_b rows per grid step.
    tb = min(block_b, _round_up(B, 8))
    Bp = _round_up(B, tb)
    if Bp != B:
        x = jnp.pad(x, ((0, Bp - B), (0, 0)))

    out = pl.pallas_call(
        ffnn_kernel,
        out_shape=jax.ShapeDtypeStruct((Bp, out_sz), jnp.float32),
        grid=(Bp // tb,),
        in_specs=[
            pl.BlockSpec((tb, K), lambda i: (i, 0)),        # activations: tiled over batch
            pl.BlockSpec((K, H1P), lambda i: (0, 0)),       # weights/biases: VMEM-resident
            pl.BlockSpec((1, H1P), lambda i: (0, 0)),
            pl.BlockSpec((H1P, H2P), lambda i: (0, 0)),
            pl.BlockSpec((1, H2P), lambda i: (0, 0)),
            pl.BlockSpec((H2P, out_sz), lambda i: (0, 0)),
            pl.BlockSpec((1, out_sz), lambda i: (0, 0)),
        ],
        out_specs=pl.BlockSpec((tb, out_sz), lambda i: (i, 0)),
        compiler_params=pltpu.CompilerParams(
            dimension_semantics=("parallel",)),             # 2 TCs on v7x; no-op elsewhere
    )(x, kparams["w1"], kparams["b1"], kparams["w2"], kparams["b2"],
      kparams["w3"], kparams["b3"])

    return out[:B]


# --------------------------------------------------------------------------
# Parameter prep: fold eval-mode BNs into the Linears (f32) and pad to lanes.
# --------------------------------------------------------------------------
def prepare_params(params):
    def bn_scale_shift(p):           # p: (4, C) = [gamma, beta, mean, var]
        scale = p[0] / jnp.sqrt(p[3] + EPS)
        shift = p[1] - p[2] * scale
        return scale, shift

    # bn_cont folds into the continuous half of W1 and into b1.
    sc, tc = bn_scale_shift(params["bn_cont"])
    w1 = jnp.concatenate([params["w1e"], params["w1c"] * sc[:, None]], axis=0)
    b1 = params["b1"] + tc @ params["w1c"]

    # bn1 (applied after ReLU) folds into W2 / b2.
    s1, t1 = bn_scale_shift(params["bn1"])
    w2 = params["w2"] * s1[:, None]
    b2 = params["b2"] + t1 @ params["w2"]

    # bn2 folds into W3 / b3.
    s2, t2 = bn_scale_shift(params["bn2"])
    w3 = params["w3"] * s2[:, None]
    b3 = params["b3"] + t2 @ params["w3"]

    # Zero-pad hidden widths to 128 lanes (padded channels stay exactly zero
    # through ReLU, so padded rows of the next weight contribute nothing).
    h1, h2 = params["w2"].shape[0], params["w3"].shape[0]
    h1p, h2p = _round_up(h1, 128), _round_up(h2, 128)
    w1 = jnp.pad(w1, ((0, 0), (0, h1p - h1)))
    b1 = jnp.pad(b1, ((0, 0), (0, h1p - h1)))
    w2 = jnp.pad(w2, ((0, h1p - h1), (0, h2p - h2)))
    b2 = jnp.pad(b2, ((0, 0), (0, h2p - h2)))
    w3 = jnp.pad(w3, ((0, h2p - h2), (0, 0)))

    f32 = jnp.float32
    return {
        "emb_tables": params["emb_tables"],
        "w1": w1.astype(f32), "b1": b1.astype(f32),
        "w2": w2.astype(f32), "b2": b2.astype(f32),
        "w3": w3.astype(f32), "b3": b3.astype(f32),
    }


# --------------------------------------------------------------------------
# Synthetic parameters matching the PyTorch module's shapes.
# --------------------------------------------------------------------------
def make_params(key, embedding_dim, n_cont, out_sz, layers):
    keys = iter(jax.random.split(key, 64))

    def bn_params(c):
        gamma = jax.random.uniform(next(keys), (c,), minval=0.5, maxval=1.5)
        beta = jax.random.normal(next(keys), (c,)) * 0.1
        mean = jax.random.normal(next(keys), (c,)) * 0.1
        var = jax.random.uniform(next(keys), (c,), minval=0.5, maxval=1.5)
        return jnp.stack([gamma, beta, mean, var]).astype(jnp.float32)  # (4, C)

    def linear(n_in, n_out):
        bound = 1.0 / np.sqrt(n_in)
        w = jax.random.uniform(next(keys), (n_in, n_out), minval=-bound, maxval=bound)
        b = jax.random.uniform(next(keys), (1, n_out), minval=-bound, maxval=bound)
        return w.astype(jnp.float32), b.astype(jnp.float32)

    emb_tables = [jax.random.normal(next(keys), (ni, nf)).astype(jnp.float32)
                  for ni, nf in embedding_dim]
    n_emb = sum(nf for _, nf in embedding_dim)

    h1, h2 = layers
    w1, b1 = linear(n_emb + n_cont, h1)
    w2, b2 = linear(h1, h2)
    w3, b3 = linear(h2, out_sz)

    return {
        "emb_tables": emb_tables,
        "bn_cont": bn_params(n_cont),
        "w1e": w1[:n_emb, :], "w1c": w1[n_emb:, :], "b1": b1, "bn1": bn_params(h1),
        "w2": w2, "b2": b2, "bn2": bn_params(h2),
        "w3": w3, "b3": b3,
    }


def reference_forward(x_cat, x_cont, params):
    """Pure-JAX reference of the same eval-mode forward (unfolded BNs)."""
    def bn(x, p):
        return (x - p[2]) / jnp.sqrt(p[3] + EPS) * p[0] + p[1]
    embs = [params["emb_tables"][i][x_cat[:, i]]
            for i in range(len(params["emb_tables"]))]
    x = jnp.concatenate(embs, axis=1)
    xc = bn(x_cont, params["bn_cont"])
    x = jnp.concatenate([x, xc], axis=1)
    w1 = jnp.concatenate([params["w1e"], params["w1c"]], axis=0)
    x = bn(jnp.maximum(x @ w1 + params["b1"], 0.0), params["bn1"])
    x = bn(jnp.maximum(x @ params["w2"] + params["b2"], 0.0), params["bn2"])
    return x @ params["w3"] + params["b3"]


if __name__ == "__main__":
    # Categorical cardinalities for ['MSSubClass', 'MSZoning', 'Street', 'LotShape']
    cat_dims = [15, 5, 2, 4]
    embedding_dim = [(x, min(50, (x + 1) // 2)) for x in cat_dims]  # (15,8),(5,3),(2,1),(4,2)
    n_cont = 5           # LotFrontage, LotArea, YearBuilt, 1stFlrSF, 2ndFlrSF
    out_sz = 1           # SalePrice
    layers = [100, 50]
    batch = 8

    key = jax.random.PRNGKey(0)
    k_param, k_cat, k_cont = jax.random.split(key, 3)

    params = make_params(k_param, embedding_dim, n_cont, out_sz, layers)
    kparams = prepare_params(params)   # fold BNs + pad to 128 lanes (one-time, f32)

    cat_keys = jax.random.split(k_cat, len(cat_dims))
    x_cat = jnp.stack(
        [jax.random.randint(cat_keys[i], (batch,), 0, cat_dims[i]) for i in range(len(cat_dims))],
        axis=1,
    ).astype(jnp.int32)                                                  # (B, 4)
    x_cont = jax.random.normal(k_cont, (batch, n_cont), dtype=jnp.float32)  # (B, 5)

    out = feedforward_nn(x_cat, x_cont, kparams)
    jax.block_until_ready(out)

    ref = reference_forward(x_cat, x_cont, params)
    np.testing.assert_allclose(np.asarray(out), np.asarray(ref), rtol=1e-4, atol=1e-4)

    print("KERNEL_OK")
</pallas_src>

<mosaic_0001>
module attributes {stable_mosaic.version = 11 : i64} {
  func.func @ffnn_kernel(%arg0: i32, %arg1: memref<8x19xf32, #tpu.memory_space<vmem>>, %arg2: memref<19x128xf32, #tpu.memory_space<vmem>>, %arg3: memref<1x128xf32, #tpu.memory_space<vmem>>, %arg4: memref<128x128xf32, #tpu.memory_space<vmem>>, %arg5: memref<1x128xf32, #tpu.memory_space<vmem>>, %arg6: memref<128x1xf32, #tpu.memory_space<vmem>>, %arg7: memref<1x1xf32, #tpu.memory_space<vmem>>, %arg8: memref<8x1xf32, #tpu.memory_space<vmem>>) attributes {dimension_semantics = [#tpu.dimension_semantics<parallel>], iteration_bounds = array<i64: 1>, scalar_prefetch = 0 : i64, scratch_operands = 0 : i64, tpu.core_type = #tpu.core_type<tc>, window_params = [{transform_indices = @transform_0, window_bounds = array<i64: 8, 19>}, {pipeline_mode = #tpu.pipeline_mode<synchronous>, transform_indices = @transform_1, window_bounds = array<i64: 19, 128>}, {pipeline_mode = #tpu.pipeline_mode<synchronous>, transform_indices = @transform_2, window_bounds = array<i64: 1, 128>}, {pipeline_mode = #tpu.pipeline_mode<synchronous>, transform_indices = @transform_3, window_bounds = array<i64: 128, 128>}, {pipeline_mode = #tpu.pipeline_mode<synchronous>, transform_indices = @transform_4, window_bounds = array<i64: 1, 128>}, {pipeline_mode = #tpu.pipeline_mode<synchronous>, transform_indices = @transform_5, window_bounds = array<i64: 128, 1>}, {pipeline_mode = #tpu.pipeline_mode<synchronous>, transform_indices = @transform_6, window_bounds = array<i64: 1, 1>}, {transform_indices = @transform_7, window_bounds = array<i64: 8, 1>}]} {
    %c0 = arith.constant 0 : index
    %c0_0 = arith.constant 0 : index
    %0 = vector.load %arg1[%c0, %c0_0] : memref<8x19xf32, #tpu.memory_space<vmem>>, vector<8x19xf32>
    %c0_1 = arith.constant 0 : index
    %c0_2 = arith.constant 0 : index
    %1 = vector.load %arg2[%c0_1, %c0_2] : memref<19x128xf32, #tpu.memory_space<vmem>>, vector<19x128xf32>
    %cst = arith.constant dense<0.000000e+00> : vector<8x128xf32>
    %2 = tpu.matmul %0, %1, %cst {dimension_numbers = #tpu.dot_dimension_numbers<[1], [0], [0], [1], [0, 0, 1, 1], [], []>} : vector<8x19xf32>, vector<19x128xf32>, vector<8x128xf32> -> vector<8x128xf32>
    %c0_3 = arith.constant 0 : index
    %c0_4 = arith.constant 0 : index
    %3 = vector.load %arg3[%c0_3, %c0_4] : memref<1x128xf32, #tpu.memory_space<vmem>>, vector<1x128xf32>
    %4 = vector.broadcast %3 : vector<1x128xf32> to vector<8x128xf32>
    %5 = arith.addf %2, %4 : vector<8x128xf32>
    %cst_5 = arith.constant 0.000000e+00 : f32
    %6 = vector.broadcast %cst_5 : f32 to vector<8x128xf32>
    %7 = arith.maximumf %5, %6 : vector<8x128xf32>
    %c0_6 = arith.constant 0 : index
    %c0_7 = arith.constant 0 : index
    %8 = vector.load %arg4[%c0_6, %c0_7] : memref<128x128xf32, #tpu.memory_space<vmem>>, vector<128x128xf32>
    %cst_8 = arith.constant dense<0.000000e+00> : vector<8x128xf32>
    %9 = tpu.matmul %7, %8, %cst_8 {dimension_numbers = #tpu.dot_dimension_numbers<[1], [0], [0], [1], [0, 0, 1, 1], [], []>} : vector<8x128xf32>, vector<128x128xf32>, vector<8x128xf32> -> vector<8x128xf32>
    %c0_9 = arith.constant 0 : index
    %c0_10 = arith.constant 0 : index
    %10 = vector.load %arg5[%c0_9, %c0_10] : memref<1x128xf32, #tpu.memory_space<vmem>>, vector<1x128xf32>
    %11 = vector.broadcast %10 : vector<1x128xf32> to vector<8x128xf32>
    %12 = arith.addf %9, %11 : vector<8x128xf32>
    %cst_11 = arith.constant 0.000000e+00 : f32
    %13 = vector.broadcast %cst_11 : f32 to vector<8x128xf32>
    %14 = arith.maximumf %12, %13 : vector<8x128xf32>
    %c0_12 = arith.constant 0 : index
    %c0_13 = arith.constant 0 : index
    %15 = vector.load %arg6[%c0_12, %c0_13] : memref<128x1xf32, #tpu.memory_space<vmem>>, vector<128x1xf32>
    %cst_14 = arith.constant dense<0.000000e+00> : vector<8x1xf32>
    %16 = tpu.matmul %14, %15, %cst_14 {dimension_numbers = #tpu.dot_dimension_numbers<[1], [0], [0], [1], [0, 0, 1, 1], [], []>} : vector<8x128xf32>, vector<128x1xf32>, vector<8x1xf32> -> vector<8x1xf32>
    %c0_15 = arith.constant 0 : index
    %c0_16 = arith.constant 0 : index
    %17 = vector.load %arg7[%c0_15, %c0_16] : memref<1x1xf32, #tpu.memory_space<vmem>>, vector<1x1xf32>
    %18 = vector.broadcast %17 : vector<1x1xf32> to vector<8x1xf32>
    %19 = arith.addf %16, %18 : vector<8x1xf32>
    %c0_17 = arith.constant 0 : index
    %c0_18 = arith.constant 0 : index
    %20 = vector.load %arg8[%c0_17, %c0_18] : memref<8x1xf32, #tpu.memory_space<vmem>>, vector<8x1xf32>
    tpu.vector_store %arg8[%c0_17, %c0_18], %19 {strides = array<i32>} : memref<8x1xf32, #tpu.memory_space<vmem>>, vector<8x1xf32>,
    return
  }
  func.func @transform_0(%arg0: i32) -> (i32, i32) {
    %c0_i32 = arith.constant 0 : i32
    %c0_i32_0 = arith.constant 0 : i32
    return %arg0, %c0_i32 : i32, i32
  }
  func.func @transform_1(%arg0: i32) -> (i32, i32) {
    %c0_i32 = arith.constant 0 : i32
    %c0_i32_0 = arith.constant 0 : i32
    %c0_i32_1 = arith.constant 0 : i32
    return %c0_i32, %c0_i32_0 : i32, i32
  }
  func.func @transform_2(%arg0: i32) -> (i32, i32) {
    %c0_i32 = arith.constant 0 : i32
    %c0_i32_0 = arith.constant 0 : i32
    %c0_i32_1 = arith.constant 0 : i32
    return %c0_i32, %c0_i32_0 : i32, i32
  }
  func.func @transform_3(%arg0: i32) -> (i32, i32) {
    %c0_i32 = arith.constant 0 : i32
    %c0_i32_0 = arith.constant 0 : i32
    %c0_i32_1 = arith.constant 0 : i32
    return %c0_i32, %c0_i32_0 : i32, i32
  }
  func.func @transform_4(%arg0: i32) -> (i32, i32) {
    %c0_i32 = arith.constant 0 : i32
    %c0_i32_0 = arith.constant 0 : i32
    %c0_i32_1 = arith.constant 0 : i32
    return %c0_i32, %c0_i32_0 : i32, i32
  }
  func.func @transform_5(%arg0: i32) -> (i32, i32) {
    %c0_i32 = arith.constant 0 : i32
    %c0_i32_0 = arith.constant 0 : i32
    %c0_i32_1 = arith.constant 0 : i32
    return %c0_i32, %c0_i32_0 : i32, i32
  }
  func.func @transform_6(%arg0: i32) -> (i32, i32) {
    %c0_i32 = arith.constant 0 : i32
    %c0_i32_0 = arith.constant 0 : i32
    %c0_i32_1 = arith.constant 0 : i32
    return %c0_i32, %c0_i32_0 : i32, i32
  }
  func.func @transform_7(%arg0: i32) -> (i32, i32) {
    %c0_i32 = arith.constant 0 : i32
    %c0_i32_0 = arith.constant 0 : i32
    return %arg0, %c0_i32 : i32, i32
  }
}

</mosaic_0001>

<llo_original>
// kernel: feedforward_nn.1
$region0: #{feedforward_nn.1}
  #allocation0 [shape = 'u32[]', space=smem, size = 0x4, offset = 0x4, fixed_abs, tag = 'smem constant byte address 0x4 - core index']
  #allocation1 [shape = 'u32[144,128]{1,0:T(1,128)}', space=vmem, size = 0x12000, scoped, tag = 'internal scratch']
  #allocation2 [shape = 'f32[1,1]{1,0:T(1,128)S(1)}', space=vmem, size = 0x200, scoped, tag = 'scoped memory for feedforward_nn.1']
  %s0 = inlined_call_operand.vmem [shape: f32[8,19], index: 0, kind: input, shape index: {}]
  %s1 = inlined_call_operand.vmem [shape: f32[19,128], index: 1, kind: input, shape index: {}]
  %s2 = inlined_call_operand.vmem [shape: f32[1,128], index: 2, kind: input, shape index: {}]
  %s3 = inlined_call_operand.vmem [shape: f32[128,128], index: 3, kind: input, shape index: {}]
  %s4 = inlined_call_operand.vmem [shape: f32[1,128], index: 4, kind: input, shape index: {}]
  %s5 = inlined_call_operand.vmem [shape: f32[128,1], index: 5, kind: input, shape index: {}]
  %s6 = inlined_call_operand.<no memory space> [shape: f32[1,1], index: 6, kind: input, shape index: {}]
  %s7 = inlined_call_operand.vmem [shape: f32[8,1], index: 7, kind: output, shape index: {}]
  %s8 = sld [smem:[#allocation0]]
  $region38: #{feedforward_nn.1} parent=0
    _
  %s10 = ssub.s32 1, %s8
  %s11 = scalar_select 0, %s10, %s8
  %v12 = vstv %s6
  %13 = vst [vmem:[#allocation2] sm:$0x1] %v12
  // Predicated region
  $region2: #{feedforward_nn.1} parent=0 // pred_check
    _
  $region3: #{feedforward_nn.1} parent=0 // pred_check_branch
    %15 = sbr.rel (0) target = $region5
  $region4: #{feedforward_nn.1} parent=0 // pred_region
    _
  $region5: #{feedforward_nn.1} parent=0 // pred_fallthru
    _
  // Predicated region
  $region6: #{feedforward_nn.1} parent=0 // pred_check
    _
  $region7: #{feedforward_nn.1} parent=0 // pred_check_branch
    %17 = sbr.rel (0) target = $region9
  $region8: #{feedforward_nn.1} parent=0 // pred_region
    _
  $region9: #{feedforward_nn.1} parent=0 // pred_fallthru
    _
  // Predicated region
  $region10: #{feedforward_nn.1} parent=0 // pred_check
    _
  $region11: #{feedforward_nn.1} parent=0 // pred_check_branch
    %19 = sbr.rel (0) target = $region13
  $region12: #{feedforward_nn.1} parent=0 // pred_region
    _
  $region13: #{feedforward_nn.1} parent=0 // pred_fallthru
    _
  // Predicated region
  $region14: #{feedforward_nn.1} parent=0 // pred_check
    _
  $region15: #{feedforward_nn.1} parent=0 // pred_check_branch
    %21 = sbr.rel (0) target = $region17
  $region16: #{feedforward_nn.1} parent=0 // pred_region
    _
  $region17: #{feedforward_nn.1} parent=0 // pred_fallthru
    _
  // Predicated region
  $region18: #{feedforward_nn.1} parent=0 // pred_check
    _
  $region19: #{feedforward_nn.1} parent=0 // pred_check_branch
    %23 = sbr.rel (0) target = $region21
  $region20: #{feedforward_nn.1} parent=0 // pred_region
    _
  $region21: #{feedforward_nn.1} parent=0 // pred_fallthru
    _
  // Predicated region
  $region22: #{feedforward_nn.1} parent=0 // pred_check
    _
  $region23: #{feedforward_nn.1} parent=0 // pred_check_branch
    %25 = sbr.rel (0) target = $region25
  $region24: #{feedforward_nn.1} parent=0 // pred_region
    _
  $region25: #{feedforward_nn.1} parent=0 // pred_fallthru
    _
  // Predicated region
  $region26: #{feedforward_nn.1} parent=0 // pred_check
    _
  $region27: #{feedforward_nn.1} parent=0 // pred_check_branch
    %27 = sbr.rel (0) target = $region29
  $region28: #{feedforward_nn.1} parent=0 // pred_region
    _
  $region29: #{feedforward_nn.1} parent=0 // pred_fallthru
    _
  %v28 = vld [vmem:[%s0] sm:$0xff]
  %v29 = vld [vmem:[%s1] sm:$0xff]
  %v30 = vld [vmem:[%s1 + $0x8] sm:$0xff]
  %v31 = vld [vmem:[%s1 + $0x10] sm:$0x7]
  %v32 = vld [vmem:[%s2] sm:$0x1]
  %v34 = vlaneseq
  %v35 = vshrl.u32 %v34, 7
  %v36 = vsub.s32 0, %v35
  %v37 = vrot.slane %v32, %v36
  %vm39 = vcmask 154624
  %v41 = vsel %vm39, %v28, 0
  %vm43 = vcmask 1042432
  %v45 = vsel %vm43, %v31, 0
  %47 = vmatprep.subr.mxu0 0.0
  %48 = vmatpush1.msra.mxu0 %v29
  %49 = vmatprep.subr.mxu0 0.0
  %50 = vmatpush1.msra.mxu0 %v30
  %51 = vmatprep.subr.mxu0 0.0
  %52 = vmatpush1.msra.mxu0 %v45
  %53 = vmatprep.subr.mxu0 0.0
  %54 = vmatpush1.msra.mxu0 0.0
  %55 = vmatprep.subr.mxu0 0.0
  %56 = vmatpush1.msra.mxu0 0.0
  %57 = vmatprep.subr.mxu0 0.0
  %58 = vmatpush1.msra.mxu0 0.0
  %59 = vmatprep.subr.mxu0 0.0
  %60 = vmatpush1.msra.mxu0 0.0
  %61 = vmatprep.subr.mxu0 0.0
  %62 = vmatpush1.msra.mxu0 0.0
  %63 = vmatprep.subr.mxu0 0.0
  %64 = vmatpush1.msra.mxu0 0.0
  %65 = vmatprep.subr.mxu0 0.0
  %66 = vmatpush1.msra.mxu0 0.0
  %67 = vmatprep.subr.mxu0 0.0
  %68 = vmatpush1.msra.mxu0 0.0
  %69 = vmatprep.subr.mxu0 0.0
  %70 = vmatpush1.msra.mxu0 0.0
  %71 = vmatprep.subr.mxu0 0.0
  %72 = vmatpush1.msra.mxu0 0.0
  %73 = vmatprep.subr.mxu0 0.0
  %74 = vmatpush1.msra.mxu0 0.0
  %75 = vmatprep.subr.mxu0 0.0
  %76 = vmatpush1.msra.mxu0 0.0
  %77 = vmatprep.subr.mxu0 0.0
  %78 = vmatpush1.msra.mxu0 0.0
  %79 = vmatprep.subr.mxu0 0.0
  %80 = vmatpush1.msra.mxu0 0.0
  %81 = vmatprep.subr.mxu0 0.0
  %82 = vmatpush1.msra.mxu0 0.0
  %83 = vmatprep.subr.mxu0 0.0
  %84 = vmatpush1.msra.mxu0 0.0
  %85 = vmatprep.subr.mxu0 0.0
  %86 = vmatpush1.msra.mxu0 0.0
  %87 = vmatprep.subr.mxu0 0.0
  %88 = vmatpush1.msra.mxu0 0.0
  %89 = vmatprep.subr.mxu0 0.0
  %90 = vmatpush1.msra.mxu0 0.0
  %91 = vmatprep.subr.mxu0 0.0
  %92 = vmatpush1.msra.mxu0 0.0
  %93 = vmatprep.subr.mxu0 0.0
  %94 = vmatpush1.msra.mxu0 0.0
  %95 = vmatprep.subr.mxu0 0.0
  %96 = vmatpush1.msra.mxu0 0.0
  %97 = vmatprep.subr.mxu0 0.0
  %98 = vmatpush1.msra.mxu0 0.0
  %99 = vmatprep.subr.mxu0 0.0
  %100 = vmatpush1.msra.mxu0 0.0
  %101 = vmatprep.subr.mxu0 0.0
  %102 = vmatpush1.msra.mxu0 0.0
  %103 = vmatprep.subr.mxu0 0.0
  %104 = vmatpush1.msra.mxu0 0.0
  %105 = vmatprep.subr.mxu0 0.0
  %106 = vmatpush1.msra.mxu0 0.0
  %107 = vmatprep.subr.mxu0 0.0
  %108 = vmatpush1.msra.mxu0 0.0
  %109 = vmatprep.subr.mxu0 0.0
  %110 = vmatpush1.msra.mxu0 0.0
  %111 = vmatprep.mubr.f32.mxu0 0.0
  %112 = vmatmul.mubr.f32.gmra.mrb[0].mxu0 %v41
  %v113 = vpop.f32.mrb[0].mxu0
  %v114 = vadd.f32 %v37, %v113
  %v115 = vpop.f32.mrb[0].mxu0
  %116 = vdwg.mxu0
  %v117 = vmax.f32 %v114, 0.0
  %v118 = vld [vmem:[%s3] sm:$0xff]
  %v119 = vld [vmem:[%s3 + $0x8] sm:$0xff]
  %v120 = vld [vmem:[%s3 + $0x10] sm:$0xff]
  %v121 = vld [vmem:[%s3 + $0x18] sm:$0xff]
  %v122 = vld [vmem:[%s3 + $0x20] sm:$0xff]
  %v123 = vld [vmem:[%s3 + $0x28] sm:$0xff]
  %v124 = vld [vmem:[%s3 + $0x30] sm:$0xff]
  %v125 = vld [vmem:[%s3 + $0x38] sm:$0xff]
  %v126 = vld [vmem:[%s3 + $0x40] sm:$0xff]
  %v127 = vld [vmem:[%s3 + $0x48] sm:$0xff]
  %v128 = vld [vmem:[%s3 + $0x50] sm:$0xff]
  %v129 = vld [vmem:[%s3 + $0x58] sm:$0xff]
  %v130 = vld [vmem:[%s3 + $0x60] sm:$0xff]
  %v131 = vld [vmem:[%s3 + $0x68] sm:$0xff]
  %v132 = vld [vmem:[%s3 + $0x70] sm:$0xff]
  %v133 = vld [vmem:[%s3 + $0x78] sm:$0xff]
  %v134 = vld [vmem:[%s4] sm:$0x1]
  %v136 = vlaneseq
  %v137 = vshrl.u32 %v136, 7
  %v138 = vsub.s32 0, %v137
  %v139 = vrot.slane %v134, %v138
  %141 = vmatprep.subr.mxu0 0.0
  %142 = vmatpush1.msra.mxu0 %v118
  %143 = vmatprep.subr.mxu0 0.0
  %144 = vmatpush1.msra.mxu0 %v119
  %145 = vmatprep.subr.mxu0 0.0
  %146 = vmatpush1.msra.mxu0 %v120
  %147 = vmatprep.subr.mxu0 0.0
  %148 = vmatpush1.msra.mxu0 %v121
  %149 = vmatprep.subr.mxu0 0.0
  %150 = vmatpush1.msra.mxu0 %v122
  %151 = vmatprep.subr.mxu0 0.0
  %152 = vmatpush1.msra.mxu0 %v123
  %153 = vmatprep.subr.mxu0 0.0
  %154 = vmatpush1.msra.mxu0 %v124
  %155 = vmatprep.subr.mxu0 0.0
  %156 = vmatpush1.msra.mxu0 %v125
  %157 = vmatprep.subr.mxu0 0.0
  %158 = vmatpush1.msra.mxu0 %v126
  %159 = vmatprep.subr.mxu0 0.0
  %160 = vmatpush1.msra.mxu0 %v127
  %161 = vmatprep.subr.mxu0 0.0
  %162 = vmatpush1.msra.mxu0 %v128
  %163 = vmatprep.subr.mxu0 0.0
  %164 = vmatpush1.msra.mxu0 %v129
  %165 = vmatprep.subr.mxu0 0.0
  %166 = vmatpush1.msra.mxu0 %v130
  %167 = vmatprep.subr.mxu0 0.0
  %168 = vmatpush1.msra.mxu0 %v131
  %169 = vmatprep.subr.mxu0 0.0
  %170 = vmatpush1.msra.mxu0 %v132
  %171 = vmatprep.subr.mxu0 0.0
  %172 = vmatpush1.msra.mxu0 %v133
  %173 = vmatprep.subr.mxu0 0.0
  %174 = vmatpush1.msra.mxu0 0.0
  %175 = vmatprep.subr.mxu0 0.0
  %176 = vmatpush1.msra.mxu0 0.0
  %177 = vmatprep.subr.mxu0 0.0
  %178 = vmatpush1.msra.mxu0 0.0
  %179 = vmatprep.subr.mxu0 0.0
  %180 = vmatpush1.msra.mxu0 0.0
  %181 = vmatprep.subr.mxu0 0.0
  %182 = vmatpush1.msra.mxu0 0.0
  %183 = vmatprep.subr.mxu0 0.0
  %184 = vmatpush1.msra.mxu0 0.0
  %185 = vmatprep.subr.mxu0 0.0
  %186 = vmatpush1.msra.mxu0 0.0
  %187 = vmatprep.subr.mxu0 0.0
  %188 = vmatpush1.msra.mxu0 0.0
  %189 = vmatprep.subr.mxu0 0.0
  %190 = vmatpush1.msra.mxu0 0.0
  %191 = vmatprep.subr.mxu0 0.0
  %192 = vmatpush1.msra.mxu0 0.0
  %193 = vmatprep.subr.mxu0 0.0
  %194 = vmatpush1.msra.mxu0 0.0
  %195 = vmatprep.subr.mxu0 0.0
  %196 = vmatpush1.msra.mxu0 0.0
  %197 = vmatprep.subr.mxu0 0.0
  %198 = vmatpush1.msra.mxu0 0.0
  %199 = vmatprep.subr.mxu0 0.0
  %200 = vmatpush1.msra.mxu0 0.0
  %201 = vmatprep.subr.mxu0 0.0
  %202 = vmatpush1.msra.mxu0 0.0
  %203 = vmatprep.subr.mxu0 0.0
  %204 = vmatpush1.msra.mxu0 0.0
  %205 = vmatprep.mubr.f32.mxu0 0.0
  %206 = vmatmul.mubr.f32.gmra.mrb[0].mxu0 %v117
  %v207 = vpop.f32.mrb[0].mxu0
  %v208 = vadd.f32 %v139, %v207
  %v209 = vpop.f32.mrb[0].mxu0
  %210 = vdwg.mxu0
  %v211 = vmax.f32 %v208, 0.0
  %v212 = vld [vmem:[%s5] sm:$0xff]
  %v213 = vld [vmem:[%s5 + $0x8] sm:$0xff]
  %v214 = vld [vmem:[%s5 + $0x10] sm:$0xff]
  %v215 = vld [vmem:[%s5 + $0x18] sm:$0xff]
  %v216 = vld [vmem:[%s5 + $0x20] sm:$0xff]
  %v217 = vld [vmem:[%s5 + $0x28] sm:$0xff]
  %v218 = vld [vmem:[%s5 + $0x30] sm:$0xff]
  %v219 = vld [vmem:[%s5 + $0x38] sm:$0xff]
  %v220 = vld [vmem:[%s5 + $0x40] sm:$0xff]
  %v221 = vld [vmem:[%s5 + $0x48] sm:$0xff]
  %v222 = vld [vmem:[%s5 + $0x50] sm:$0xff]
  %v223 = vld [vmem:[%s5 + $0x58] sm:$0xff]
  %v224 = vld [vmem:[%s5 + $0x60] sm:$0xff]
  %v225 = vld [vmem:[%s5 + $0x68] sm:$0xff]
  %v226 = vld [vmem:[%s5 + $0x70] sm:$0xff]
  %v227 = vld [vmem:[%s5 + $0x78] sm:$0xff]
  %v228 = vld [vmem:[#allocation2] sm:$0x1]
  %v230 = vlaneseq
  %v231 = vshrl.u32 %v230, 7
  %v232 = vsub.s32 0, %v231
  %v233 = vrot.slane %v228, %v232
  %235 = vmatprep.subr.mxu0 0.0
  %236 = vmatpush1.msra.mxu0 %v212
  %237 = vmatprep.subr.mxu0 0.0
  %238 = vmatpush1.msra.mxu0 %v213
  %239 = vmatprep.subr.mxu0 0.0
  %240 = vmatpush1.msra.mxu0 %v214
  %241 = vmatprep.subr.mxu0 0.0
  %242 = vmatpush1.msra.mxu0 %v215
  %243 = vmatprep.subr.mxu0 0.0
  %244 = vmatpush1.msra.mxu0 %v216
  %245 = vmatprep.subr.mxu0 0.0
  %246 = vmatpush1.msra.mxu0 %v217
  %247 = vmatprep.subr.mxu0 0.0
  %248 = vmatpush1.msra.mxu0 %v218
  %249 = vmatprep.subr.mxu0 0.0
  %250 = vmatpush1.msra.mxu0 %v219
  %251 = vmatprep.subr.mxu0 0.0
  %252 = vmatpush1.msra.mxu0 %v220
  %253 = vmatprep.subr.mxu0 0.0
  %254 = vmatpush1.msra.mxu0 %v221
  %255 = vmatprep.subr.mxu0 0.0
  %256 = vmatpush1.msra.mxu0 %v222
  %257 = vmatprep.subr.mxu0 0.0
  %258 = vmatpush1.msra.mxu0 %v223
  %259 = vmatprep.subr.mxu0 0.0
  %260 = vmatpush1.msra.mxu0 %v224
  %261 = vmatprep.subr.mxu0 0.0
  %262 = vmatpush1.msra.mxu0 %v225
  %263 = vmatprep.subr.mxu0 0.0
  %264 = vmatpush1.msra.mxu0 %v226
  %265 = vmatprep.subr.mxu0 0.0
  %266 = vmatpush1.msra.mxu0 %v227
  %267 = vmatprep.subr.mxu0 0.0
  %268 = vmatpush1.msra.mxu0 0.0
  %269 = vmatprep.subr.mxu0 0.0
  %270 = vmatpush1.msra.mxu0 0.0
  %271 = vmatprep.subr.mxu0 0.0
  %272 = vmatpush1.msra.mxu0 0.0
  %273 = vmatprep.subr.mxu0 0.0
  %274 = vmatpush1.msra.mxu0 0.0
  %275 = vmatprep.subr.mxu0 0.0
  %276 = vmatpush1.msra.mxu0 0.0
  %277 = vmatprep.subr.mxu0 0.0
  %278 = vmatpush1.msra.mxu0 0.0
  %279 = vmatprep.subr.mxu0 0.0
  %280 = vmatpush1.msra.mxu0 0.0
  %281 = vmatprep.subr.mxu0 0.0
  %282 = vmatpush1.msra.mxu0 0.0
  %283 = vmatprep.subr.mxu0 0.0
  %284 = vmatpush1.msra.mxu0 0.0
  %285 = vmatprep.subr.mxu0 0.0
  %286 = vmatpush1.msra.mxu0 0.0
  %287 = vmatprep.subr.mxu0 0.0
  %288 = vmatpush1.msra.mxu0 0.0
  %289 = vmatprep.subr.mxu0 0.0
  %290 = vmatpush1.msra.mxu0 0.0
  %291 = vmatprep.subr.mxu0 0.0
  %292 = vmatpush1.msra.mxu0 0.0
  %293 = vmatprep.subr.mxu0 0.0
  %294 = vmatpush1.msra.mxu0 0.0
  %295 = vmatprep.subr.mxu0 0.0
  %296 = vmatpush1.msra.mxu0 0.0
  %297 = vmatprep.subr.mxu0 0.0
  %298 = vmatpush1.msra.mxu0 0.0
  %299 = vmatprep.mubr.f32.mxu0 0.0
  %300 = vmatmul.mubr.f32.gmra.mrb[0].mxu0 %v211
  %v301 = vpop.f32.mrb[0].mxu0
  %v302 = vadd.f32 %v233, %v301
  %v303 = vpop.f32.mrb[0].mxu0
  %304 = vdwg.mxu0
  %vm305 = vcmask 7168
  %306 = vst.msk [vmem:[%s7] sm:$0xff] %vm305, %v302
  // Predicated region
  $region30: #{feedforward_nn.1} parent=0 // pred_check
    _
  $region31: #{feedforward_nn.1} parent=0 // pred_check_branch
    %308 = sbr.rel (0) target = $region33
  $region32: #{feedforward_nn.1} parent=0 // pred_region
    _
  $region33: #{feedforward_nn.1} parent=0 // pred_fallthru
    _
  // Predicated region
  $region34: #{feedforward_nn.1} parent=0 // pred_check
    _
  $region35: #{feedforward_nn.1} parent=0 // pred_check_branch
    %310 = sbr.rel (0) target = $region37
  $region36: #{feedforward_nn.1} parent=0 // pred_region
    _
  $region37: #{feedforward_nn.1} parent=0 // pred_fallthru
    _

</llo_original>
